<compile_context>
chip_gen: v7x
topology: tpu7x:2x2x1
jax: 0.10.0
libtpu: 0.0.40
codegen_flags: <defaults>
</compile_context>

<pallas_src>
import functools

import jax
import jax.numpy as jnp
from jax.experimental import pallas as pl
from jax.experimental.pallas import tpu as pltpu


def _round_up(a, b):
    return (a + b - 1) // b * b


# --------------------------- Stage 1: projection ---------------------------
def gat_project_kernel(x_ref, w_ref, asrc_vec_ref, adst_vec_ref,
                       xp_ref, asrc_ref, adst_ref, *, heads, out_channels):
    c = out_channels
    xp = jnp.dot(x_ref[...], w_ref[...], preferred_element_type=jnp.float32)
    xp_ref[...] = xp                                   # [N, H*C]
    # Exact per-head attention coefficients (elementwise mul + lane reduce),
    # same association as the reference:
    #   a_src[j, h] = sum_c xp[j, h*C + c] * att_src[h, c]
    asrc_cols, adst_cols = [], []
    for h in range(heads):                             # small static -> unrolled
        xh = xp[:, h * c:(h + 1) * c]                  # [N, C]
        asrc_cols.append(jnp.sum(xh * asrc_vec_ref[h:h + 1, :],
                                 axis=-1, keepdims=True))
        adst_cols.append(jnp.sum(xh * adst_vec_ref[h:h + 1, :],
                                 axis=-1, keepdims=True))
    asrc_ref[...] = jnp.concatenate(asrc_cols, axis=-1)   # [N, H]
    adst_ref[...] = jnp.concatenate(adst_cols, axis=-1)   # [N, H]


def gat_project(x, w, att_src, att_dst, *, heads, out_channels):
    n = x.shape[0]
    hc = w.shape[1]
    vmem = pl.BlockSpec(memory_space=pltpu.MemorySpace.VMEM)
    kernel = functools.partial(gat_project_kernel, heads=heads,
                               out_channels=out_channels)
    return pl.pallas_call(
        kernel,
        out_shape=(
            jax.ShapeDtypeStruct((n, hc), jnp.float32),     # x @ W
            jax.ShapeDtypeStruct((n, heads), jnp.float32),  # a_src
            jax.ShapeDtypeStruct((n, heads), jnp.float32),  # a_dst
        ),
        in_specs=[vmem] * 4,
        out_specs=(vmem, vmem, vmem),
        compiler_params=pltpu.CompilerParams(vmem_limit_bytes=32 * 1024 * 1024),
    )(x, w, att_src, att_dst)


# ------------------ Stage 2: tiled attention + aggregation -----------------
def gat_attend_kernel(asrc_ref, xp_ref, bias_ref, adst_ref, adj_ref, out_ref, *,
                      heads, out_channels, concat, apply_relu,
                      negative_slope=0.2):
    c = out_channels
    mask = adj_ref[...] != 0          # [TM, N] edge mask from the int8 stream
    xp = xp_ref[...]                  # [N, H*C]   (VMEM-resident across tiles)
    asrc = asrc_ref[...]              # [H, N]
    adst = adst_ref[...]              # [TM, H]
    bias = bias_ref[...]              # [1, Dout]

    acc_mean = None
    for h in range(heads):            # heads is a small static int -> unrolled
        # logits[i, j] = leaky_relu(a_dst[i, h] + a_src[h, j])
        logits = adst[:, h:h + 1] + asrc[h:h + 1, :]                  # [TM, N]
        logits = jnp.where(logits > 0.0, logits, negative_slope * logits)
        logits = jnp.where(mask, logits, -1e30)
        # Masked softmax over source nodes j (per target i).
        m = jnp.max(logits, axis=-1, keepdims=True)                   # [TM, 1]
        p = jnp.exp(logits - m)   # masked entries underflow to exactly 0
        # NOTE: self-loops guarantee >=1 unmasked entry per real row, so
        # denom >= 1 (no division by zero) and no re-mask of p is needed.
        denom = jnp.sum(p, axis=-1, keepdims=True)                    # [TM, 1]
        # BUGFIX: exact reciprocal (the approx EUP vrcp broke the 1e-3 check).
        attn = p * (1.0 / denom)                                      # [TM, N]
        xh = xp[:, h * c:(h + 1) * c]                                 # [N, C]
        acc = jnp.dot(attn, xh, preferred_element_type=jnp.float32)   # MXU
        if concat:
            oh = acc + bias[:, h * c:(h + 1) * c]
            if apply_relu:
                oh = jnp.maximum(oh, 0.0)
            # Direct store into this head's lane slice (no jnp.concatenate of
            # narrow slabs, shorter live ranges).
            out_ref[:, h * c:(h + 1) * c] = oh
        else:
            acc_mean = acc if acc_mean is None else acc_mean + acc

    if not concat:
        out = acc_mean * (1.0 / heads) + bias
        if apply_relu:
            out = jnp.maximum(out, 0.0)
        out_ref[...] = out


def gat_layer(x, w, att_src, att_dst, bias, adj, *, heads, out_channels,
              concat, apply_relu, block_rows=512):
    n, fin = x.shape
    hc = heads * out_channels
    dout = hc if concat else out_channels

    # Row tile: multiple of 32 (int8 adjacency sublane tile), capped.
    tm = min(_round_up(block_rows, 32), _round_up(n, 32))
    np_ = _round_up(n, tm)

    # Pad nodes to a multiple of the row tile.  Padded rows/cols carry no
    # edges; their (finite, garbage) outputs are sliced away below.
    if np_ != n:
        x = jnp.pad(x, ((0, np_ - n), (0, 0)))
        adj = jnp.pad(adj, ((0, np_ - n), (0, np_ - n)))
    adj = adj.astype(jnp.int8)

    xp, asrc, adst = gat_project(x, w, att_src, att_dst,
                                 heads=heads, out_channels=out_channels)
    asrc_t = asrc.T          # [H, Np] tiny wrapper-side transpose (layout only)

    kernel = functools.partial(
        gat_attend_kernel, heads=heads, out_channels=out_channels,
        concat=concat, apply_relu=apply_relu)

    out = pl.pallas_call(
        kernel,
        out_shape=jax.ShapeDtypeStruct((np_, dout), jnp.float32),
        grid_spec=pltpu.PrefetchScalarGridSpec(
            num_scalar_prefetch=0,
            grid=(np_ // tm,),
            in_specs=[
                pl.BlockSpec((heads, np_), lambda i: (0, 0)),   # a_src^T (resident)
                pl.BlockSpec((np_, hc), lambda i: (0, 0)),      # x @ W   (resident)
                pl.BlockSpec((1, dout), lambda i: (0, 0)),      # bias    (resident)
                pl.BlockSpec((tm, heads), lambda i: (i, 0)),    # a_dst row tile
                pl.BlockSpec((tm, np_), lambda i: (i, 0)),      # adj row tile (int8)
            ],
            out_specs=pl.BlockSpec((tm, dout), lambda i: (i, 0)),
        ),
        compiler_params=pltpu.CompilerParams(
            dimension_semantics=("parallel",),   # v7x: split row tiles across 2 TCs
            vmem_limit_bytes=32 * 1024 * 1024,
        ),
    )(asrc_t, xp, bias, adst, adj)
    return out[:n]


def gat_forward(x, adj, params, *, block_rows=512):
    # conv1: heads=2, concat=True, then ReLU
    h = gat_layer(x, params["w1"], params["as1"], params["ad1"], params["b1"],
                  adj, heads=2, out_channels=params["hidden_dim"],
                  concat=True, apply_relu=True, block_rows=block_rows)
    # conv2: heads=1, concat=False (mean over the single head)
    return gat_layer(h, params["w2"], params["as2"], params["ad2"], params["b2"],
                     adj, heads=1, out_channels=params["out_dim"],
                     concat=False, apply_relu=False, block_rows=block_rows)


# ---------------- pure-JAX reference (for verification) ----------------
def gat_layer_ref(x, w, att_src, att_dst, bias, adj, *, heads, out_channels,
                  concat, apply_relu, negative_slope=0.2):
    hp = jax.lax.Precision.HIGHEST
    xp = jnp.dot(x, w, precision=hp)
    edge_mask = adj != 0
    outs = []
    for h in range(heads):
        xh = xp[:, h * out_channels:(h + 1) * out_channels]
        a_src = jnp.sum(xh * att_src[h][None, :], axis=-1, keepdims=True)
        a_dst = jnp.sum(xh * att_dst[h][None, :], axis=-1, keepdims=True)
        logits = a_dst + a_src.T
        logits = jnp.where(logits > 0.0, logits, negative_slope * logits)
        logits = jnp.where(edge_mask, logits, -1e30)
        p = jnp.exp(logits - jnp.max(logits, axis=-1, keepdims=True))
        p = jnp.where(edge_mask, p, 0.0)
        attn = p / jnp.sum(p, axis=-1, keepdims=True)
        outs.append(jnp.dot(attn, xh, precision=hp))
    out = jnp.concatenate(outs, -1) if concat else sum(outs) / heads
    out = out + bias
    return jnp.maximum(out, 0.0) if apply_relu else out


def gat_forward_ref(x, adj, params):
    h = gat_layer_ref(x, params["w1"], params["as1"], params["ad1"],
                      params["b1"], adj, heads=2,
                      out_channels=params["hidden_dim"], concat=True,
                      apply_relu=True)
    return gat_layer_ref(h, params["w2"], params["as2"], params["ad2"],
                         params["b2"], adj, heads=1,
                         out_channels=params["out_dim"], concat=False,
                         apply_relu=False)


if __name__ == "__main__":
    key = jax.random.PRNGKey(0)
    N, in_dim, hidden_dim, out_dim = 64, 8, 8, 4
    heads1 = 2

    keys = jax.random.split(key, 10)
    # Node features
    x = jax.random.normal(keys[0], (N, in_dim), dtype=jnp.float32)

    # Deterministic edge_index [2, E]: ring + random edges (row 0 = src, row 1 = dst)
    ring_src = jnp.arange(N, dtype=jnp.int32)
    ring_dst = (ring_src + 1) % N
    rnd_src = jax.random.randint(keys[1], (3 * N,), 0, N, dtype=jnp.int32)
    rnd_dst = jax.random.randint(keys[2], (3 * N,), 0, N, dtype=jnp.int32)
    edge_index = jnp.stack([jnp.concatenate([ring_src, rnd_src]),
                            jnp.concatenate([ring_dst, rnd_dst])])

    # Dense int8 adjacency with self loops (PyG add_self_loops=True): adj[dst, src] = 1
    adj = jnp.zeros((N, N), jnp.int8)
    adj = adj.at[edge_index[1], edge_index[0]].set(1)
    adj = adj.at[jnp.arange(N), jnp.arange(N)].set(1)

    def glorot(k, shape):
        fan = shape[-2] + shape[-1] if len(shape) >= 2 else shape[-1]
        std = (2.0 / fan) ** 0.5
        return std * jax.random.normal(k, shape, dtype=jnp.float32)

    params = {
        "hidden_dim": hidden_dim,
        "out_dim": out_dim,
        # conv1: Linear(in_dim -> heads1*hidden_dim, bias=False), att [H, C]
        "w1": glorot(keys[3], (in_dim, heads1 * hidden_dim)),
        "as1": glorot(keys[4], (heads1, hidden_dim)),
        "ad1": glorot(keys[5], (heads1, hidden_dim)),
        "b1": jnp.zeros((1, heads1 * hidden_dim), jnp.float32),
        # conv2: Linear(heads1*hidden_dim -> out_dim), heads=1
        "w2": glorot(keys[6], (heads1 * hidden_dim, out_dim)),
        "as2": glorot(keys[7], (1, out_dim)),
        "ad2": glorot(keys[8], (1, out_dim)),
        "b2": jnp.zeros((1, out_dim), jnp.float32),
    }

    # block_rows=32 -> row tile of 32 over 64 nodes = a 2-step grid, so the
    # tiled/pipelined path is exercised even at this small test size.
    out = jax.block_until_ready(gat_forward(x, adj, params, block_rows=32))
    ref = jax.block_until_ready(gat_forward_ref(x, adj, params))

    assert out.shape == (N, out_dim), out.shape
    err = float(jnp.max(jnp.abs(out - ref)))
    # Tolerance leaves headroom for MXU default-precision accumulation-order
    # differences between the Pallas kernel and the XLA reference; genuine
    # logic bugs (masking/softmax/aggregation) produce O(0.1 - 1) errors.
    assert jnp.allclose(out, ref, atol=1e-2, rtol=1e-2), err
    print("KERNEL_OK")
</pallas_src>

<mosaic_0001>
module attributes {stable_mosaic.version = 11 : i64} {
  func.func @gat_project_kernel(%arg0: memref<64x8xf32, #tpu.memory_space<vmem>>, %arg1: memref<8x16xf32, #tpu.memory_space<vmem>>, %arg2: memref<2x8xf32, #tpu.memory_space<vmem>>, %arg3: memref<2x8xf32, #tpu.memory_space<vmem>>, %arg4: memref<64x16xf32, #tpu.memory_space<vmem>>, %arg5: memref<64x2xf32, #tpu.memory_space<vmem>>, %arg6: memref<64x2xf32, #tpu.memory_space<vmem>>) attributes {dimension_semantics = [], scalar_prefetch = 0 : i64, scratch_operands = 0 : i64, tpu.core_type = #tpu.core_type<tc>} {
    %c0 = arith.constant 0 : index
    %c0_0 = arith.constant 0 : index
    %0 = vector.load %arg0[%c0, %c0_0] : memref<64x8xf32, #tpu.memory_space<vmem>>, vector<64x8xf32>
    %c0_1 = arith.constant 0 : index
    %c0_2 = arith.constant 0 : index
    %1 = vector.load %arg1[%c0_1, %c0_2] : memref<8x16xf32, #tpu.memory_space<vmem>>, vector<8x16xf32>
    %cst = arith.constant dense<0.000000e+00> : vector<64x16xf32>
    %2 = tpu.matmul %0, %1, %cst {dimension_numbers = #tpu.dot_dimension_numbers<[1], [0], [0], [1], [0, 0, 1, 1], [], []>} : vector<64x8xf32>, vector<8x16xf32>, vector<64x16xf32> -> vector<64x16xf32>
    %c0_3 = arith.constant 0 : index
    %c0_4 = arith.constant 0 : index
    %3 = vector.load %arg4[%c0_3, %c0_4] : memref<64x16xf32, #tpu.memory_space<vmem>>, vector<64x16xf32>
    tpu.vector_store %arg4[%c0_3, %c0_4], %2 {strides = array<i32>} : memref<64x16xf32, #tpu.memory_space<vmem>>, vector<64x16xf32>,
    %4 = vector.extract_strided_slice %2 {offsets = [0, 0], sizes = [64, 8], strides = [1, 1]} : vector<64x16xf32> to vector<64x8xf32>
    %c0_5 = arith.constant 0 : index
    %c0_6 = arith.constant 0 : index
    %5 = vector.load %arg2[%c0_5, %c0_6] : memref<2x8xf32, #tpu.memory_space<vmem>>, vector<1x8xf32>
    %6 = vector.broadcast %5 : vector<1x8xf32> to vector<64x8xf32>
    %7 = arith.mulf %4, %6 : vector<64x8xf32>
    %cst_7 = arith.constant dense<0.000000e+00> : vector<64xf32>
    %8 = vector.multi_reduction <add>, %7, %cst_7 [1] : vector<64x8xf32> to vector<64xf32>
    %9 = vector.shape_cast %8 : vector<64xf32> to vector<64x1xf32>
    %c0_8 = arith.constant 0 : index
    %c0_9 = arith.constant 0 : index
    %10 = vector.load %arg3[%c0_8, %c0_9] : memref<2x8xf32, #tpu.memory_space<vmem>>, vector<1x8xf32>
    %11 = vector.broadcast %10 : vector<1x8xf32> to vector<64x8xf32>
    %12 = arith.mulf %4, %11 : vector<64x8xf32>
    %cst_10 = arith.constant dense<0.000000e+00> : vector<64xf32>
    %13 = vector.multi_reduction <add>, %12, %cst_10 [1] : vector<64x8xf32> to vector<64xf32>
    %14 = vector.shape_cast %13 : vector<64xf32> to vector<64x1xf32>
    %15 = vector.extract_strided_slice %2 {offsets = [0, 8], sizes = [64, 8], strides = [1, 1]} : vector<64x16xf32> to vector<64x8xf32>
    %c1 = arith.constant 1 : index
    %c0_11 = arith.constant 0 : index
    %16 = vector.load %arg2[%c1, %c0_11] : memref<2x8xf32, #tpu.memory_space<vmem>>, vector<1x8xf32>
    %17 = vector.broadcast %16 : vector<1x8xf32> to vector<64x8xf32>
    %18 = arith.mulf %15, %17 : vector<64x8xf32>
    %cst_12 = arith.constant dense<0.000000e+00> : vector<64xf32>
    %19 = vector.multi_reduction <add>, %18, %cst_12 [1] : vector<64x8xf32> to vector<64xf32>
    %20 = vector.shape_cast %19 : vector<64xf32> to vector<64x1xf32>
    %c1_13 = arith.constant 1 : index
    %c0_14 = arith.constant 0 : index
    %21 = vector.load %arg3[%c1_13, %c0_14] : memref<2x8xf32, #tpu.memory_space<vmem>>, vector<1x8xf32>
    %22 = vector.broadcast %21 : vector<1x8xf32> to vector<64x8xf32>
    %23 = arith.mulf %15, %22 : vector<64x8xf32>
    %cst_15 = arith.constant dense<0.000000e+00> : vector<64xf32>
    %24 = vector.multi_reduction <add>, %23, %cst_15 [1] : vector<64x8xf32> to vector<64xf32>
    %25 = vector.shape_cast %24 : vector<64xf32> to vector<64x1xf32>
    %26 = tpu.concatenate %9, %20 in 1 : vector<64x1xf32>, vector<64x1xf32> -> vector<64x2xf32>
    %c0_16 = arith.constant 0 : index
    %c0_17 = arith.constant 0 : index
    %27 = vector.load %arg5[%c0_16, %c0_17] : memref<64x2xf32, #tpu.memory_space<vmem>>, vector<64x2xf32>
    tpu.vector_store %arg5[%c0_16, %c0_17], %26 {strides = array<i32>} : memref<64x2xf32, #tpu.memory_space<vmem>>, vector<64x2xf32>,
    %28 = tpu.concatenate %14, %25 in 1 : vector<64x1xf32>, vector<64x1xf32> -> vector<64x2xf32>
    %c0_18 = arith.constant 0 : index
    %c0_19 = arith.constant 0 : index
    %29 = vector.load %arg6[%c0_18, %c0_19] : memref<64x2xf32, #tpu.memory_space<vmem>>, vector<64x2xf32>
    tpu.vector_store %arg6[%c0_18, %c0_19], %28 {strides = array<i32>} : memref<64x2xf32, #tpu.memory_space<vmem>>, vector<64x2xf32>,
    return
  }
}

</mosaic_0001>

<llo_original>
// kernel: tpu_custom_call.1
$region0: #{tpu_custom_call.1}
  #allocation0 [shape = 'u32[]', space=smem, size = 0x4, offset = 0x4, fixed_abs, tag = 'smem constant byte address 0x4 - core index']
  #allocation1 [shape = 'u32[144,128]{1,0:T(1,128)}', space=vmem, size = 0x12000, scoped, tag = 'internal scratch']
  %s0 = inlined_call_operand.vmem [shape: f32[64,8], index: 0, kind: input, shape index: {}]
  %s1 = inlined_call_operand.vmem [shape: f32[8,16], index: 1, kind: input, shape index: {}]
  %s2 = inlined_call_operand.vmem [shape: f32[2,8], index: 2, kind: input, shape index: {}]
  %s3 = inlined_call_operand.vmem [shape: f32[2,8], index: 3, kind: input, shape index: {}]
  %s4 = inlined_call_operand.vmem [shape: f32[64,16], index: 4, kind: output, shape index: {0}]
  %s5 = inlined_call_operand.vmem [shape: f32[64,2], index: 5, kind: output, shape index: {1}]
  %s6 = inlined_call_operand.vmem [shape: f32[64,2], index: 6, kind: output, shape index: {2}]
  %7 = xla_tuple %s4, %s5, %s6
  %s8 = sld [smem:[#allocation0]]
  $region42: #{tpu_custom_call.1} parent=0
    _
  %s10 = ssub.s32 1, %s8
  %s11 = scalar_select 0, %s10, %s8
  // Predicated region
  $region2: #{tpu_custom_call.1} parent=0 // pred_check
    _
  $region3: #{tpu_custom_call.1} parent=0 // pred_check_branch
    %13 = sbr.rel (0) target = $region5
  $region4: #{tpu_custom_call.1} parent=0 // pred_region
    _
  $region5: #{tpu_custom_call.1} parent=0 // pred_fallthru
    _
  // Predicated region
  $region6: #{tpu_custom_call.1} parent=0 // pred_check
    _
  $region7: #{tpu_custom_call.1} parent=0 // pred_check_branch
    %15 = sbr.rel (0) target = $region9
  $region8: #{tpu_custom_call.1} parent=0 // pred_region
    _
  $region9: #{tpu_custom_call.1} parent=0 // pred_fallthru
    _
  // Predicated region
  $region10: #{tpu_custom_call.1} parent=0 // pred_check
    _
  $region11: #{tpu_custom_call.1} parent=0 // pred_check_branch
    %17 = sbr.rel (0) target = $region13
  $region12: #{tpu_custom_call.1} parent=0 // pred_region
    _
  $region13: #{tpu_custom_call.1} parent=0 // pred_fallthru
    _
  // Predicated region
  $region14: #{tpu_custom_call.1} parent=0 // pred_check
    _
  $region15: #{tpu_custom_call.1} parent=0 // pred_check_branch
    %19 = sbr.rel (0) target = $region17
  $region16: #{tpu_custom_call.1} parent=0 // pred_region
    _
  $region17: #{tpu_custom_call.1} parent=0 // pred_fallthru
    _
  %v20 = vld [vmem:[%s0] sm:$0xff]
  %v21 = vld [vmem:[%s0 + $0x8] sm:$0xff]
  %v22 = vld [vmem:[%s0 + $0x10] sm:$0xff]
  %v23 = vld [vmem:[%s0 + $0x18] sm:$0xff]
  %v24 = vld [vmem:[%s0 + $0x20] sm:$0xff]
  %v25 = vld [vmem:[%s0 + $0x28] sm:$0xff]
  %v26 = vld [vmem:[%s0 + $0x30] sm:$0xff]
  %v27 = vld [vmem:[%s0 + $0x38] sm:$0xff]
  %v28 = vld [vmem:[%s1] sm:$0xff]
  %vm29 = vcmask 64512
  %v31 = vsel %vm29, %v20, 0
  %v34 = vsel %vm29, %v21, 0
  %v37 = vsel %vm29, %v22, 0
  %v40 = vsel %vm29, %v23, 0
  %v43 = vsel %vm29, %v24, 0
  %v46 = vsel %vm29, %v25, 0
  %v49 = vsel %vm29, %v26, 0
  %v52 = vsel %vm29, %v27, 0
  %54 = vmatprep.subr.mxu0 0.0
  %55 = vmatpush1.msra.mxu0 %v28
  %56 = vmatprep.subr.mxu0 0.0
  %57 = vmatpush1.msra.mxu0 0.0
  %58 = vmatprep.subr.mxu0 0.0
  %59 = vmatpush1.msra.mxu0 0.0
  %60 = vmatprep.subr.mxu0 0.0
  %61 = vmatpush1.msra.mxu0 0.0
  %62 = vmatprep.subr.mxu0 0.0
  %63 = vmatpush1.msra.mxu0 0.0
  %64 = vmatprep.subr.mxu0 0.0
  %65 = vmatpush1.msra.mxu0 0.0
  %66 = vmatprep.subr.mxu0 0.0
  %67 = vmatpush1.msra.mxu0 0.0
  %68 = vmatprep.subr.mxu0 0.0
  %69 = vmatpush1.msra.mxu0 0.0
  %70 = vmatprep.subr.mxu0 0.0
  %71 = vmatpush1.msra.mxu0 0.0
  %72 = vmatprep.subr.mxu0 0.0
  %73 = vmatpush1.msra.mxu0 0.0
  %74 = vmatprep.subr.mxu0 0.0
  %75 = vmatpush1.msra.mxu0 0.0
  %76 = vmatprep.subr.mxu0 0.0
  %77 = vmatpush1.msra.mxu0 0.0
  %78 = vmatprep.subr.mxu0 0.0
  %79 = vmatpush1.msra.mxu0 0.0
  %80 = vmatprep.subr.mxu0 0.0
  %81 = vmatpush1.msra.mxu0 0.0
  %82 = vmatprep.subr.mxu0 0.0
  %83 = vmatpush1.msra.mxu0 0.0
  %84 = vmatprep.subr.mxu0 0.0
  %85 = vmatpush1.msra.mxu0 0.0
  %86 = vmatprep.subr.mxu0 0.0
  %87 = vmatpush1.msra.mxu0 0.0
  %88 = vmatprep.subr.mxu0 0.0
  %89 = vmatpush1.msra.mxu0 0.0
  %90 = vmatprep.subr.mxu0 0.0
  %91 = vmatpush1.msra.mxu0 0.0
  %92 = vmatprep.subr.mxu0 0.0
  %93 = vmatpush1.msra.mxu0 0.0
  %94 = vmatprep.subr.mxu0 0.0
  %95 = vmatpush1.msra.mxu0 0.0
  %96 = vmatprep.subr.mxu0 0.0
  %97 = vmatpush1.msra.mxu0 0.0
  %98 = vmatprep.subr.mxu0 0.0
  %99 = vmatpush1.msra.mxu0 0.0
  %100 = vmatprep.subr.mxu0 0.0
  %101 = vmatpush1.msra.mxu0 0.0
  %102 = vmatprep.subr.mxu0 0.0
  %103 = vmatpush1.msra.mxu0 0.0
  %104 = vmatprep.subr.mxu0 0.0
  %105 = vmatpush1.msra.mxu0 0.0
  %106 = vmatprep.subr.mxu0 0.0
  %107 = vmatpush1.msra.mxu0 0.0
  %108 = vmatprep.subr.mxu0 0.0
  %109 = vmatpush1.msra.mxu0 0.0
  %110 = vmatprep.subr.mxu0 0.0
  %111 = vmatpush1.msra.mxu0 0.0
  %112 = vmatprep.subr.mxu0 0.0
  %113 = vmatpush1.msra.mxu0 0.0
  %114 = vmatprep.subr.mxu0 0.0
  %115 = vmatpush1.msra.mxu0 0.0
  %116 = vmatprep.subr.mxu0 0.0
  %117 = vmatpush1.msra.mxu0 0.0
  %118 = vmatprep.mubr.f32.mxu0 0.0
  %119 = vmatmul.mubr.f32.gmra.mrb[0].mxu0 %v31
  %v120 = vpop.f32.mrb[0].mxu0
  %v121 = vadd.f32 0.0, %v120
  %v122 = vpop.f32.mrb[0].mxu0
  %123 = vmatprep.mubr.f32.mxu0 0.0
  %124 = vmatmul.mubr.f32.gmra.mrb[0].mxu0 %v34
  %v125 = vpop.f32.mrb[0].mxu0
  %v126 = vadd.f32 0.0, %v125
  %v127 = vpop.f32.mrb[0].mxu0
  %128 = vmatprep.mubr.f32.mxu0 0.0
  %129 = vmatmul.mubr.f32.gmra.mrb[0].mxu0 %v37
  %v130 = vpop.f32.mrb[0].mxu0
  %v131 = vadd.f32 0.0, %v130
  %v132 = vpop.f32.mrb[0].mxu0
  %133 = vmatprep.mubr.f32.mxu0 0.0
  %134 = vmatmul.mubr.f32.gmra.mrb[0].mxu0 %v40
  %v135 = vpop.f32.mrb[0].mxu0
  %v136 = vadd.f32 0.0, %v135
  %v137 = vpop.f32.mrb[0].mxu0
  %138 = vmatprep.mubr.f32.mxu0 0.0
  %139 = vmatmul.mubr.f32.gmra.mrb[0].mxu0 %v43
  %v140 = vpop.f32.mrb[0].mxu0
  %v141 = vadd.f32 0.0, %v140
  %v142 = vpop.f32.mrb[0].mxu0
  %143 = vmatprep.mubr.f32.mxu0 0.0
  %144 = vmatmul.mubr.f32.gmra.mrb[0].mxu0 %v46
  %v145 = vpop.f32.mrb[0].mxu0
  %v146 = vadd.f32 0.0, %v145
  %v147 = vpop.f32.mrb[0].mxu0
  %148 = vmatprep.mubr.f32.mxu0 0.0
  %149 = vmatmul.mubr.f32.gmra.mrb[0].mxu0 %v49
  %v150 = vpop.f32.mrb[0].mxu0
  %v151 = vadd.f32 0.0, %v150
  %v152 = vpop.f32.mrb[0].mxu0
  %153 = vmatprep.mubr.f32.mxu0 0.0
  %154 = vmatmul.mubr.f32.gmra.mrb[0].mxu0 %v52
  %v155 = vpop.f32.mrb[0].mxu0
  %v156 = vadd.f32 0.0, %v155
  %v157 = vpop.f32.mrb[0].mxu0
  %158 = vdwg.mxu0
  %vm159 = vcmask 130048
  %160 = vst.msk [vmem:[%s4] sm:$0xff] %vm159, %v121
  %161 = vst.msk [vmem:[%s4 + $0x8] sm:$0xff] %vm159, %v126
  %162 = vst.msk [vmem:[%s4 + $0x10] sm:$0xff] %vm159, %v131
  %163 = vst.msk [vmem:[%s4 + $0x18] sm:$0xff] %vm159, %v136
  %164 = vst.msk [vmem:[%s4 + $0x20] sm:$0xff] %vm159, %v141
  %165 = vst.msk [vmem:[%s4 + $0x28] sm:$0xff] %vm159, %v146
  %166 = vst.msk [vmem:[%s4 + $0x30] sm:$0xff] %vm159, %v151
  %167 = vst.msk [vmem:[%s4 + $0x38] sm:$0xff] %vm159, %v156
  %v168 = vld [vmem:[%s2] sm:$0x1]
  %v169 = vlaneseq
  %v170 = vshrl.u32 %v169, 7
  %v171 = vsub.s32 0, %v170
  %v172 = vrot.slane %v168, %v171
  %v173 = vmul.f32 %v121, %v172
  %v174 = vmul.f32 %v126, %v172
  %v175 = vmul.f32 %v131, %v172
  %v176 = vmul.f32 %v136, %v172
  %v177 = vmul.f32 %v141, %v172
  %v178 = vmul.f32 %v146, %v172
  %v179 = vmul.f32 %v151, %v172
  %v180 = vmul.f32 %v156, %v172
  %v181 = vsel %vm29, %v173, 0.0
  %182 = vadd.xlane.f32.xlu0 %v181
  %v183 = vpop.xlane.xlu0 %182
  %v184 = vsel %vm29, %v174, 0.0
  %185 = vadd.xlane.f32.xlu0 %v184
  %v186 = vpop.xlane.xlu0 %185
  %v187 = vsel %vm29, %v175, 0.0
  %188 = vadd.xlane.f32.xlu0 %v187
  %v189 = vpop.xlane.xlu0 %188
  %v190 = vsel %vm29, %v176, 0.0
  %191 = vadd.xlane.f32.xlu0 %v190
  %v192 = vpop.xlane.xlu0 %191
  %v193 = vsel %vm29, %v177, 0.0
  %194 = vadd.xlane.f32.xlu0 %v193
  %v195 = vpop.xlane.xlu0 %194
  %v196 = vsel %vm29, %v178, 0.0
  %197 = vadd.xlane.f32.xlu0 %v196
  %v198 = vpop.xlane.xlu0 %197
  %v199 = vsel %vm29, %v179, 0.0
  %200 = vadd.xlane.f32.xlu0 %v199
  %v201 = vpop.xlane.xlu0 %200
  %v202 = vsel %vm29, %v180, 0.0
  %203 = vadd.xlane.f32.xlu0 %v202
  %v204 = vpop.xlane.xlu0 %203
  %v205 = vld [vmem:[%s3] sm:$0x1]
  %v206 = vlaneseq
  %v207 = vshrl.u32 %v206, 7
  %v208 = vsub.s32 0, %v207
  %v209 = vrot.slane %v205, %v208
  %v210 = vmul.f32 %v121, %v209
  %v211 = vmul.f32 %v126, %v209
  %v212 = vmul.f32 %v131, %v209
  %v213 = vmul.f32 %v136, %v209
  %v214 = vmul.f32 %v141, %v209
  %v215 = vmul.f32 %v146, %v209
  %v216 = vmul.f32 %v151, %v209
  %v217 = vmul.f32 %v156, %v209
  %v218 = vsel %vm29, %v210, 0.0
  %219 = vadd.xlane.f32.xlu0 %v218
  %v220 = vpop.xlane.xlu0 %219
  %v221 = vsel %vm29, %v211, 0.0
  %222 = vadd.xlane.f32.xlu0 %v221
  %v223 = vpop.xlane.xlu0 %222
  %v224 = vsel %vm29, %v212, 0.0
  %225 = vadd.xlane.f32.xlu0 %v224
  %v226 = vpop.xlane.xlu0 %225
  %v227 = vsel %vm29, %v213, 0.0
  %228 = vadd.xlane.f32.xlu0 %v227
  %v229 = vpop.xlane.xlu0 %228
  %v230 = vsel %vm29, %v214, 0.0
  %231 = vadd.xlane.f32.xlu0 %v230
  %v232 = vpop.xlane.xlu0 %231
  %v233 = vsel %vm29, %v215, 0.0
  %234 = vadd.xlane.f32.xlu0 %v233
  %v235 = vpop.xlane.xlu0 %234
  %v236 = vsel %vm29, %v216, 0.0
  %237 = vadd.xlane.f32.xlu0 %v236
  %v238 = vpop.xlane.xlu0 %237
  %v239 = vsel %vm29, %v217, 0.0
  %240 = vadd.xlane.f32.xlu0 %v239
  %v241 = vpop.xlane.xlu0 %240
  %v242 = vld [vmem:[%s2 + $0x1] sm:$0x1]
  %v243 = vlaneseq
  %v244 = vshrl.u32 %v243, 7
  %v245 = vsub.s32 0, %v244
  %v246 = vrot.slane %v242, %v245
  %248 = vrot.lane.b32.xlu0 %v246, 8
  %v249 = vpop.permute.xlu0 %248
  %v251 = vmul.f32 %v121, %v249
  %v252 = vmul.f32 %v126, %v249
  %v253 = vmul.f32 %v131, %v249
  %v254 = vmul.f32 %v136, %v249
  %v255 = vmul.f32 %v141, %v249
  %v256 = vmul.f32 %v146, %v249
  %v257 = vmul.f32 %v151, %v249
  %v258 = vmul.f32 %v156, %v249
  %267 = vrot.lane.b32.xlu0 %v251, 120
  %v268 = vpop.permute.xlu0 %267
  %269 = vrot.lane.b32.xlu0 %v252, 120
  %v270 = vpop.permute.xlu0 %269
  %271 = vrot.lane.b32.xlu0 %v253, 120
  %v272 = vpop.permute.xlu0 %271
  %273 = vrot.lane.b32.xlu0 %v254, 120
  %v274 = vpop.permute.xlu0 %273
  %275 = vrot.lane.b32.xlu0 %v255, 120
  %v276 = vpop.permute.xlu0 %275
  %277 = vrot.lane.b32.xlu0 %v256, 120
  %v278 = vpop.permute.xlu0 %277
  %279 = vrot.lane.b32.xlu0 %v257, 120
  %v280 = vpop.permute.xlu0 %279
  %281 = vrot.lane.b32.xlu0 %v258, 120
  %v282 = vpop.permute.xlu0 %281
  %v291 = vsel %vm29, %v268, 0.0
  %292 = vadd.xlane.f32.xlu0 %v291
  %v293 = vpop.xlane.xlu0 %292
  %v294 = vsel %vm29, %v270, 0.0
  %295 = vadd.xlane.f32.xlu0 %v294
  %v296 = vpop.xlane.xlu0 %295
  %v297 = vsel %vm29, %v272, 0.0
  %298 = vadd.xlane.f32.xlu0 %v297
  %v299 = vpop.xlane.xlu0 %298
  %v300 = vsel %vm29, %v274, 0.0
  %301 = vadd.xlane.f32.xlu0 %v300
  %v302 = vpop.xlane.xlu0 %301
  %v303 = vsel %vm29, %v276, 0.0
  %304 = vadd.xlane.f32.xlu0 %v303
  %v305 = vpop.xlane.xlu0 %304
  %v306 = vsel %vm29, %v278, 0.0
  %307 = vadd.xlane.f32.xlu0 %v306
  %v308 = vpop.xlane.xlu0 %307
  %v309 = vsel %vm29, %v280, 0.0
  %310 = vadd.xlane.f32.xlu0 %v309
  %v311 = vpop.xlane.xlu0 %310
  %v312 = vsel %vm29, %v282, 0.0
  %313 = vadd.xlane.f32.xlu0 %v312
  %v314 = vpop.xlane.xlu0 %313
  %v315 = vld [vmem:[%s3 + $0x1] sm:$0x1]
  %v316 = vlaneseq
  %v317 = vshrl.u32 %v316, 7
  %v318 = vsub.s32 0, %v317
  %v319 = vrot.slane %v315, %v318
  %321 = vrot.lane.b32.xlu0 %v319, 8
  %v322 = vpop.permute.xlu0 %321
  %v324 = vmul.f32 %v121, %v322
  %v325 = vmul.f32 %v126, %v322
  %v326 = vmul.f32 %v131, %v322
  %v327 = vmul.f32 %v136, %v322
  %v328 = vmul.f32 %v141, %v322
  %v329 = vmul.f32 %v146, %v322
  %v330 = vmul.f32 %v151, %v322
  %v331 = vmul.f32 %v156, %v322
  %340 = vrot.lane.b32.xlu0 %v324, 120
  %v341 = vpop.permute.xlu0 %340
  %342 = vrot.lane.b32.xlu0 %v325, 120
  %v343 = vpop.permute.xlu0 %342
  %344 = vrot.lane.b32.xlu0 %v326, 120
  %v345 = vpop.permute.xlu0 %344
  %346 = vrot.lane.b32.xlu0 %v327, 120
  %v347 = vpop.permute.xlu0 %346
  %348 = vrot.lane.b32.xlu0 %v328, 120
  %v349 = vpop.permute.xlu0 %348
  %350 = vrot.lane.b32.xlu0 %v329, 120
  %v351 = vpop.permute.xlu0 %350
  %352 = vrot.lane.b32.xlu0 %v330, 120
  %v353 = vpop.permute.xlu0 %352
  %354 = vrot.lane.b32.xlu0 %v331, 120
  %v355 = vpop.permute.xlu0 %354
  %v364 = vsel %vm29, %v341, 0.0
  %365 = vadd.xlane.f32.xlu0 %v364
  %v366 = vpop.xlane.xlu0 %365
  %v367 = vsel %vm29, %v343, 0.0
  %368 = vadd.xlane.f32.xlu0 %v367
  %v369 = vpop.xlane.xlu0 %368
  %v370 = vsel %vm29, %v345, 0.0
  %371 = vadd.xlane.f32.xlu0 %v370
  %v372 = vpop.xlane.xlu0 %371
  %v373 = vsel %vm29, %v347, 0.0
  %374 = vadd.xlane.f32.xlu0 %v373
  %v375 = vpop.xlane.xlu0 %374
  %v376 = vsel %vm29, %v349, 0.0
  %377 = vadd.xlane.f32.xlu0 %v376
  %v378 = vpop.xlane.xlu0 %377
  %v379 = vsel %vm29, %v351, 0.0
  %380 = vadd.xlane.f32.xlu0 %v379
  %v381 = vpop.xlane.xlu0 %380
  %v382 = vsel %vm29, %v353, 0.0
  %383 = vadd.xlane.f32.xlu0 %v382
  %v384 = vpop.xlane.xlu0 %383
  %v385 = vsel %vm29, %v355, 0.0
  %386 = vadd.xlane.f32.xlu0 %v385
  %v387 = vpop.xlane.xlu0 %386
  %vm388 = vcmask 7168
  %v389 = vsel %vm388, %v183, %v293
  %v390 = vsel %vm388, %v186, %v296
  %v391 = vsel %vm388, %v189, %v299
  %v392 = vsel %vm388, %v192, %v302
  %v393 = vsel %vm388, %v195, %v305
  %v394 = vsel %vm388, %v198, %v308
  %v395 = vsel %vm388, %v201, %v311
  %v396 = vsel %vm388, %v204, %v314
  %vm397 = vcmask 15360
  %398 = vst.msk [vmem:[%s5] sm:$0xff] %vm397, %v389
  %399 = vst.msk [vmem:[%s5 + $0x8] sm:$0xff] %vm397, %v390
  %400 = vst.msk [vmem:[%s5 + $0x10] sm:$0xff] %vm397, %v391
  %401 = vst.msk [vmem:[%s5 + $0x18] sm:$0xff] %vm397, %v392
  %402 = vst.msk [vmem:[%s5 + $0x20] sm:$0xff] %vm397, %v393
  %403 = vst.msk [vmem:[%s5 + $0x28] sm:$0xff] %vm397, %v394
  %404 = vst.msk [vmem:[%s5 + $0x30] sm:$0xff] %vm397, %v395
  %405 = vst.msk [vmem:[%s5 + $0x38] sm:$0xff] %vm397, %v396
  %v406 = vsel %vm388, %v220, %v366
  %v407 = vsel %vm388, %v223, %v369
  %v408 = vsel %vm388, %v226, %v372
  %v409 = vsel %vm388, %v229, %v375
  %v410 = vsel %vm388, %v232, %v378
  %v411 = vsel %vm388, %v235, %v381
  %v412 = vsel %vm388, %v238, %v384
  %v413 = vsel %vm388, %v241, %v387
  %414 = vst.msk [vmem:[%s6] sm:$0xff] %vm397, %v406
  %415 = vst.msk [vmem:[%s6 + $0x8] sm:$0xff] %vm397, %v407
  %416 = vst.msk [vmem:[%s6 + $0x10] sm:$0xff] %vm397, %v408
  %417 = vst.msk [vmem:[%s6 + $0x18] sm:$0xff] %vm397, %v409
  %418 = vst.msk [vmem:[%s6 + $0x20] sm:$0xff] %vm397, %v410
  %419 = vst.msk [vmem:[%s6 + $0x28] sm:$0xff] %vm397, %v411
  %420 = vst.msk [vmem:[%s6 + $0x30] sm:$0xff] %vm397, %v412
  %421 = vst.msk [vmem:[%s6 + $0x38] sm:$0xff] %vm397, %v413
  // Predicated region
  $region18: #{tpu_custom_call.1} parent=0 // pred_check
    _
  $region19: #{tpu_custom_call.1} parent=0 // pred_check_branch
    %423 = sbr.rel (0) target = $region21
  $region20: #{tpu_custom_call.1} parent=0 // pred_region
    _
  $region21: #{tpu_custom_call.1} parent=0 // pred_fallthru
    _
  // Predicated region
  $region22: #{tpu_custom_call.1} parent=0 // pred_check
    _
  $region23: #{tpu_custom_call.1} parent=0 // pred_check_branch
    %425 = sbr.rel (0) target = $region25
  $region24: #{tpu_custom_call.1} parent=0 // pred_region
    _
  $region25: #{tpu_custom_call.1} parent=0 // pred_fallthru
    _
  // Predicated region
  $region26: #{tpu_custom_call.1} parent=0 // pred_check
    _
  $region27: #{tpu_custom_call.1} parent=0 // pred_check_branch
    %427 = sbr.rel (0) target = $region29
  $region28: #{tpu_custom_call.1} parent=0 // pred_region
    _
  $region29: #{tpu_custom_call.1} parent=0 // pred_fallthru
    _
  // Predicated region
  $region30: #{tpu_custom_call.1} parent=0 // pred_check
    _
  $region31: #{tpu_custom_call.1} parent=0 // pred_check_branch
    %429 = sbr.rel (0) target = $region33
  $region32: #{tpu_custom_call.1} parent=0 // pred_region
    _
  $region33: #{tpu_custom_call.1} parent=0 // pred_fallthru
    _
  // Predicated region
  $region34: #{tpu_custom_call.1} parent=0 // pred_check
    _
  $region35: #{tpu_custom_call.1} parent=0 // pred_check_branch
    %431 = sbr.rel (0) target = $region37
  $region36: #{tpu_custom_call.1} parent=0 // pred_region
    _
  $region37: #{tpu_custom_call.1} parent=0 // pred_fallthru
    _
  // Predicated region
  $region38: #{tpu_custom_call.1} parent=0 // pred_check
    _
  $region39: #{tpu_custom_call.1} parent=0 // pred_check_branch
    %433 = sbr.rel (0) target = $region41
  $region40: #{tpu_custom_call.1} parent=0 // pred_region
    _
  $region41: #{tpu_custom_call.1} parent=0 // pred_fallthru
    _

</llo_original>
